<compile_context>
chip_gen: v5e
topology: v5e:2x2
jax: 0.10.0
libtpu: 0.0.40
codegen_flags: <defaults>
</compile_context>

<pallas_src>
import functools

import jax
import jax.numpy as jnp
from jax.experimental import pallas as pl
from jax.experimental.pallas import tpu as pltpu


def _moving_avg_kernel(x_ref, w_ref, o_ref, *, inv_k):
    # x_ref: (TILE_R, L)   rows of the flattened (B*C, L) input, native dtype.
    # w_ref: (1, L, TN)    integer tap counts for this output-column tile.
    # o_ref: (TILE_R, TN)
    acc = jnp.dot(x_ref[...], w_ref[0], preferred_element_type=jnp.float32)
    o_ref[...] = (acc * inv_k).astype(o_ref.dtype)


def _build_count_slab(length, kernel_size, stride, tn, n_col_tiles, dtype):
    """W[j, p, t] = # taps of output window (j*tn + t) that read input position p.

    Window taps q in [i*stride - pad, i*stride - pad + k) are clamped to
    [0, L-1] (edge replication); counting how many land on each p folds the
    replicate-pad, the stride and the window sum into one matrix.  Columns
    beyond L_out (ragged last column tile) are zero.
    """
    pad = (kernel_size - 1) // 2
    l_out = (length + 2 * pad - kernel_size) // stride + 1
    l_out_pad = tn * n_col_tiles
    p = jnp.arange(length, dtype=jnp.int32)[:, None]                     # (L, 1)
    i = jnp.arange(l_out_pad, dtype=jnp.int32)[None, :]                  # (1, L_out_pad)
    start = i * stride - pad
    end = start + kernel_size - 1                                        # inclusive
    big = jnp.int32(2 ** 30)
    lo = jnp.where(p == 0, -big, p)              # clamp pre-image of position p
    hi = jnp.where(p == length - 1, big, p)
    cnt = jnp.clip(jnp.minimum(end, hi) - jnp.maximum(start, lo) + 1, 0, kernel_size)
    cnt = jnp.where(i < l_out, cnt, 0)           # zero the padded tail columns
    w = cnt.astype(dtype)                        # exact integer counts (k <= 256 in bf16)
    return w.reshape(length, n_col_tiles, tn).transpose(1, 0, 2)         # (J, L, TN)


def _round_down(v, m):
    return (v // m) * m


def _tpu_vmem_bytes():
    try:
        info = pltpu.get_tpu_info()
        for name in ("vmem_capacity_bytes", "vmem_bytes", "vmem_size_bytes"):
            v = getattr(info, name, None)
            if v:
                return int(v)
    except Exception:
        pass
    return 128 * 1024 * 1024


def _choose_tiling(n_rows, l_in, l_out, x_bytes, w_bytes):
    """Pick (tile_r, tn, n_col_tiles, vmem_limit) per TPU generation."""
    vmem_phys = _tpu_vmem_bytes()
    vmem_limit = max(32 << 20, min((vmem_phys * 3) // 4, 96 << 20))
    # v7x (64 MiB VMEM, 3.2 TB/s HBM) needs bigger steps to amortize the
    # ~0.35 us/step pipeline overhead; v5e/v6e (128 MiB VMEM) use ~7 MiB steps.
    target_step_bytes = (12 << 20) if vmem_phys <= (80 << 20) else (7 << 20)

    # Column tiles bound the dense (L, L_out) count-matrix block to a few MiB.
    w_block_cap = 6 << 20
    if l_out <= 128 or l_in * l_out * w_bytes <= w_block_cap:
        tn, n_col = l_out, 1
    else:
        tn = max(128, _round_down(w_block_cap // (l_in * w_bytes), 128))
        tn = min(tn, _round_down(l_out, 128))
        n_col = pl.cdiv(l_out, tn)

    # Row tile: ~target bytes per step, capped so double-buffered x/out blocks
    # plus the (double-buffered) W block fit the VMEM limit with headroom.
    per_row = (l_in + tn) * x_bytes + tn * 4           # x row + out row + f32 acc row
    tile_r = max(8, target_step_bytes // per_row)
    avail = max(vmem_limit - 2 * l_in * tn * w_bytes - (2 << 20), 1 << 20)
    tile_r = min(tile_r, max(8, avail // (2 * (l_in + tn) * x_bytes + tn * 4)))

    if tile_r >= n_rows:
        if n_col == 1 and n_rows >= 512:
            # Keep >=2 "parallel" row steps so both v7x TensorCores get work.
            tile_r = max(256, _round_down(pl.cdiv(n_rows, 2), 256))
        else:
            tile_r = n_rows                            # single full-extent block
    elif tile_r >= 256:
        tile_r = _round_down(tile_r, 256)              # MXU-native M (2x256x256)
    else:
        tile_r = max(8, _round_down(tile_r, 8))
    return tile_r, tn, n_col, vmem_limit


def moving_avg_forward(x, kernel_size, stride, *, _row_tile=None, _col_tile=None):
    """x: [B, C, L] -> [B, C, L_out]  (edge-replicated moving average)."""
    B, C, L = x.shape
    pad = (kernel_size - 1) // 2
    L_out = (L + 2 * pad - kernel_size) // stride + 1
    R = B * C

    # Integer tap counts are exact in bf16 up to k = 256; match x's dtype so the
    # MXU runs a native single-pass matmul with an f32 accumulator.
    if x.dtype == jnp.bfloat16 and kernel_size <= 256:
        w_dtype = jnp.bfloat16
    else:
        w_dtype = jnp.float32
    x_bytes = x.dtype.itemsize
    w_bytes = jnp.dtype(w_dtype).itemsize

    tile_r, tn, n_col, vmem_limit = _choose_tiling(R, L, L_out, x_bytes, w_bytes)
    if _col_tile is not None:                          # test/bench override
        tn = _col_tile if _col_tile < L_out else L_out
        n_col = pl.cdiv(L_out, tn)
    if _row_tile is not None:
        tile_r = _row_tile if _row_tile < R else R

    w_slab = _build_count_slab(L, kernel_size, stride, tn, n_col, w_dtype)  # (J, L, TN)
    x2 = x.reshape(R, L)                               # free (metadata) reshape

    n_row = pl.cdiv(R, tile_r)
    # Rows outer / columns inner: the x row block's DMA is elided across the
    # column tiles of one row tile; the (<= few MiB) W block is refetched per
    # row tile only when n_col > 1 (large-L regime).
    grid = (n_row, n_col)

    kernel = functools.partial(_moving_avg_kernel, inv_k=1.0 / float(kernel_size))
    out2 = pl.pallas_call(
        kernel,
        out_shape=jax.ShapeDtypeStruct((R, L_out), x.dtype),
        grid_spec=pltpu.PrefetchScalarGridSpec(
            num_scalar_prefetch=0,
            grid=grid,
            in_specs=[
                # Full-L row tile.  (Sweep pipeline_mode=pl.Buffered(3) here if
                # xprof ever shows exposed input DMA, most likely on v7x.)
                pl.BlockSpec((tile_r, L), lambda r, c: (r, 0)),
                # Count-matrix slab: grid-invariant when n_col == 1 (fetched
                # once, copy elided); otherwise one lane-dense column band per
                # step.  (pl.Buffered(1) here would drop its second buffer.)
                pl.BlockSpec((1, L, tn), lambda r, c: (c, 0, 0)),
            ],
            out_specs=pl.BlockSpec((tile_r, tn), lambda r, c: (r, c)),
        ),
        compiler_params=pltpu.CompilerParams(
            dimension_semantics=("parallel", "parallel"),
            vmem_limit_bytes=int(vmem_limit),
        ),
        cost_estimate=pl.CostEstimate(
            flops=2 * R * L * (tn * n_col),
            transcendentals=0,
            bytes_accessed=(R * L + R * L_out) * x_bytes
            + n_row * n_col * L * tn * w_bytes,
        ),
    )(x2, w_slab)
    return out2.reshape(B, C, L_out)


def moving_avg_reference(x, kernel_size, stride):
    """Pure-JAX reference mirroring the PyTorch module exactly."""
    pad = (kernel_size - 1) // 2
    if pad > 0:
        front = jnp.repeat(x[:, :, 0:1], pad, axis=2)
        end = jnp.repeat(x[:, :, -1:], pad, axis=2)
        xp = jnp.concatenate([front, x, end], axis=2)
    else:
        xp = x
    L_pad = xp.shape[-1]
    L_out = (L_pad - kernel_size) // stride + 1
    windows = jnp.stack(
        [xp[:, :, i * stride: i * stride + kernel_size] for i in range(L_out)],
        axis=2,
    )  # [B, C, L_out, k]
    return windows.mean(axis=-1).astype(x.dtype)


if __name__ == "__main__":
    key = jax.random.PRNGKey(0)

    # Default-precision MXU matmul rounds x through bf16 inside the MXU (the
    # integer tap counts in W stay exact; the 1/k scale is applied in f32), so
    # compare against the f32 reference at bf16-level tolerance.
    TOL = dict(atol=2e-2, rtol=2e-2)

    B, C, L = 2, 4, 16
    x = jax.random.normal(key, (B, C, L), dtype=jnp.float32)

    # Autoformer-style odd kernel / stride 1, even kernel + stride > 1
    # (asymmetric pad), and the k=1 / pad=0 edge case.
    for k, s in ((5, 1), (6, 3), (1, 1)):
        out = jax.block_until_ready(moving_avg_forward(x, k, s))
        ref = moving_avg_reference(x, k, s)
        assert out.shape == ref.shape, (k, s, out.shape, ref.shape)
        assert jnp.allclose(out, ref, **TOL), f"mismatch (k={k}, stride={s})"

    # Multi-block path: forced small row/column tiles exercise the 2-D grid,
    # the ragged last column tile (zero-padded W slab + masked store) and the
    # per-row-tile W refetch ordering.
    x2 = jax.random.normal(jax.random.PRNGKey(1), (2, 16, 300), dtype=jnp.float32)
    out = jax.block_until_ready(
        moving_avg_forward(x2, 5, 1, _row_tile=8, _col_tile=128))
    ref = moving_avg_reference(x2, 5, 1)
    assert out.shape == ref.shape, (out.shape, ref.shape)
    assert jnp.allclose(out, ref, **TOL), "mismatch (multi-tile path)"

    print("KERNEL_OK")
</pallas_src>

<mosaic_0001>
module attributes {stable_mosaic.version = 11 : i64} {
  func.func @_moving_avg_kernel(%arg0: i32, %arg1: i32, %arg2: memref<8x16xf32, #tpu.memory_space<vmem>>, %arg3: memref<1x16x16xf32, #tpu.memory_space<vmem>>, %arg4: memref<8x16xf32, #tpu.memory_space<vmem>>) attributes {dimension_semantics = [#tpu.dimension_semantics<parallel>, #tpu.dimension_semantics<parallel>], iteration_bounds = array<i64: 1, 1>, scalar_prefetch = 0 : i64, scratch_operands = 0 : i64, tpu.core_type = #tpu.core_type<tc>, window_params = [{transform_indices = @transform_0, window_bounds = array<i64: 8, 16>}, {transform_indices = @transform_1, window_bounds = array<i64: 1, 16, 16>}, {transform_indices = @transform_2, window_bounds = array<i64: 8, 16>}]} {
    %c0 = arith.constant 0 : index
    %c0_0 = arith.constant 0 : index
    %0 = vector.load %arg2[%c0, %c0_0] : memref<8x16xf32, #tpu.memory_space<vmem>>, vector<8x16xf32>
    %c0_1 = arith.constant 0 : index
    %c0_2 = arith.constant 0 : index
    %c0_3 = arith.constant 0 : index
    %1 = vector.load %arg3[%c0_1, %c0_2, %c0_3] : memref<1x16x16xf32, #tpu.memory_space<vmem>>, vector<1x16x16xf32>
    %2 = vector.shape_cast %1 : vector<1x16x16xf32> to vector<16x16xf32>
    %cst = arith.constant dense<0.000000e+00> : vector<8x16xf32>
    %3 = tpu.matmul %0, %2, %cst {dimension_numbers = #tpu.dot_dimension_numbers<[1], [0], [0], [1], [0, 0, 1, 1], [], []>} : vector<8x16xf32>, vector<16x16xf32>, vector<8x16xf32> -> vector<8x16xf32>
    %cst_4 = arith.constant 2.000000e-01 : f32
    %4 = vector.broadcast %cst_4 : f32 to vector<8x16xf32>
    %5 = arith.mulf %3, %4 : vector<8x16xf32>
    %c0_5 = arith.constant 0 : index
    %c0_6 = arith.constant 0 : index
    %6 = vector.load %arg4[%c0_5, %c0_6] : memref<8x16xf32, #tpu.memory_space<vmem>>, vector<8x16xf32>
    tpu.vector_store %arg4[%c0_5, %c0_6], %5 {strides = array<i32>} : memref<8x16xf32, #tpu.memory_space<vmem>>, vector<8x16xf32>,
    return
  }
  func.func @transform_0(%arg0: i32, %arg1: i32) -> (i32, i32) {
    %c0_i32 = arith.constant 0 : i32
    %c0_i32_0 = arith.constant 0 : i32
    return %arg0, %c0_i32 : i32, i32
  }
  func.func @transform_1(%arg0: i32, %arg1: i32) -> (i32, i32, i32) {
    %c0_i32 = arith.constant 0 : i32
    %c0_i32_0 = arith.constant 0 : i32
    %c0_i32_1 = arith.constant 0 : i32
    return %arg1, %c0_i32, %c0_i32_0 : i32, i32, i32
  }
  func.func @transform_2(%arg0: i32, %arg1: i32) -> (i32, i32) {
    %c0_i32 = arith.constant 0 : i32
    return %arg0, %arg1 : i32, i32
  }
}

</mosaic_0001>

<llo_original>
// kernel: tpu_custom_call.1
$region0: #{tpu_custom_call.1}
  #allocation0 [shape = 'u32[]', space=smem, size = 0x4, offset = 0x4, fixed_abs, tag = 'smem constant byte address 0x4 - core index']
  #allocation1 [shape = 'u32[72,128]{1,0:T(1,128)}', space=vmem, size = 0x9000, scoped, tag = 'internal scratch']
  %s0 = inlined_call_operand.hbm [shape: f32[8,16], index: 0, kind: input, shape index: {}]
  %s1 = inlined_call_operand.hbm [shape: f32[1,16,16], index: 1, kind: input, shape index: {}]
  %s2 = inlined_call_operand.hbm [shape: f32[8,16], index: 2, kind: output, shape index: {}]
  %s3 = sld [smem:[#allocation0]]
  $region26: #{tpu_custom_call.1} parent=0
    _
  %s5 = ssub.s32 1, %s3
  %s6 = scalar_select 0, %s5, %s3
  $region1: #{tpu_custom_call.1} parent=0
    #allocation2 [shape = 'u8[4096]{0}', space=vmem, size = 0x1000, scoped, tag = 'input window, operand 0, single buffered']
    #allocation3 [shape = 's32[1]{0}', space=sflag, size = 0x4, scoped, tag = 'scoped memory for tpu_custom_call.1']
    #allocation4 [shape = 's32[1]{0}', space=sflag, size = 0x4, scoped, tag = 'scoped memory for tpu_custom_call.1']
    #allocation5 [shape = 'u8[8192]{0}', space=vmem, size = 0x2000, scoped, tag = 'input window, operand 1, single buffered']
    #allocation6 [shape = 's32[1]{0}', space=sflag, size = 0x4, scoped, tag = 'scoped memory for tpu_custom_call.1']
    #allocation7 [shape = 'u8[4096]{0}', space=vmem, size = 0x1000, scoped, tag = 'output window, operand 0, single buffered']
    %7 = vsyncpa [#allocation3], 0
    %8 = vsyncpa [#allocation6], 0
    %9 = vsyncpa [#allocation4], 0
    // Predicated region
    $region2: #{tpu_custom_call.1} parent=1 // pred_check
      _
    $region3: #{tpu_custom_call.1} parent=1 // pred_check_branch
      %11 = sbr.rel (0) target = $region5
    $region4: #{tpu_custom_call.1} parent=1 // pred_region
      %13 = vsyncadd [#allocation3], 0
      %s15 = sshll.u32 %s0, 4
      %s16 = int_to_ptr.hbm [resolvable:$true] %s15
      %s17 = sshll.u32 [#allocation2], 4
      %s18 = int_to_ptr.vmem [resolvable:$true] %s17
      %20 = dma.hbm_to_vmem [thread:$0]  %s16, 128, %s18, [#allocation3]
    $region5: #{tpu_custom_call.1} parent=1 // pred_fallthru
      _
    // Predicated region
    $region6: #{tpu_custom_call.1} parent=1 // pred_check
      _
    $region7: #{tpu_custom_call.1} parent=1 // pred_check_branch
      %22 = sbr.rel (0) target = $region9
    $region8: #{tpu_custom_call.1} parent=1 // pred_region
      %24 = vsyncadd [#allocation6], 0
      %s25 = sshll.u32 %s1, 4
      %s26 = int_to_ptr.hbm [resolvable:$true] %s25
      %s27 = sshll.u32 [#allocation5], 4
      %s28 = int_to_ptr.vmem [resolvable:$true] %s27
      %33 = dma.hbm_to_vmem [thread:$0]  %s26, 256, %s28, [#allocation6], 128, 128, 8
    $region9: #{tpu_custom_call.1} parent=1 // pred_fallthru
      _
    // Predicated region
    $region10: #{tpu_custom_call.1} parent=1 // pred_check
      _
    $region11: #{tpu_custom_call.1} parent=1 // pred_check_branch
      %35 = sbr.rel (0) target = $region13
    $region12: #{tpu_custom_call.1} parent=1 // pred_region
      %37 = dma.done [#allocation3], 128
    $region13: #{tpu_custom_call.1} parent=1 // pred_fallthru
      _
    // Predicated region
    $region14: #{tpu_custom_call.1} parent=1 // pred_check
      _
    $region15: #{tpu_custom_call.1} parent=1 // pred_check_branch
      %39 = sbr.rel (0) target = $region17
    $region16: #{tpu_custom_call.1} parent=1 // pred_region
      %41 = dma.done [#allocation6], 256
    $region17: #{tpu_custom_call.1} parent=1 // pred_fallthru
      _
    %v42 = vld [vmem:[#allocation2] sm:$0xff]
    %v43 = vld [vmem:[#allocation5] sm:$0xff]
    %v44 = vld [vmem:[#allocation5 + $0x8] sm:$0xff]
    %vm45 = vcmask 130048
    %v47 = vsel %vm45, %v42, 0
    %49 = vmatpush.msra.mxu0 0.0
    %50 = vmatpush.msra.mxu0 0.0
    %51 = vmatpush.msra.mxu0 0.0
    %52 = vmatpush.msra.mxu0 0.0
    %53 = vmatpush.msra.mxu0 0.0
    %54 = vmatpush.msra.mxu0 0.0
    %55 = vmatpush.msra.mxu0 0.0
    %56 = vmatpush.msra.mxu0 0.0
    %57 = vmatpush.msra.mxu0 0.0
    %58 = vmatpush.msra.mxu0 0.0
    %59 = vmatpush.msra.mxu0 0.0
    %60 = vmatpush.msra.mxu0 0.0
    %61 = vmatpush.msra.mxu0 0.0
    %62 = vmatpush.msra.mxu0 0.0
    %63 = vmatpush.msra.mxu0 %v44
    %64 = vmatpush.msra.mxu0 %v43
    %65 = vmatmul.f32.gmra.mxu0 %v47
    %v66 = vpop.f32.mrf.mxu0
    %v67 = vadd.f32 0.0, %v66
    %68 = vdwg.mxu0
    %v69 = vmul.f32 %v67, 0.2
    %70 = vst.msk [vmem:[#allocation7] sm:$0xff] %vm45, %v69
    // Predicated region
    $region18: #{tpu_custom_call.1} parent=1 // pred_check
      _
    $region19: #{tpu_custom_call.1} parent=1 // pred_check_branch
      %72 = sbr.rel (0) target = $region21
    $region20: #{tpu_custom_call.1} parent=1 // pred_region
      %74 = vsyncadd [#allocation4], 0
      %s76 = sshll.u32 [#allocation7], 4
      %s77 = int_to_ptr.vmem [resolvable:$true] %s76
      %s78 = sshll.u32 %s2, 4
      %s79 = int_to_ptr.hbm [resolvable:$true] %s78
      %81 = dma.vmem_to_hbm [thread:$0]  %s77, 128, %s79, [#allocation4]
    $region21: #{tpu_custom_call.1} parent=1 // pred_fallthru
      _
    // Predicated region
    $region22: #{tpu_custom_call.1} parent=1 // pred_check
      _
    $region23: #{tpu_custom_call.1} parent=1 // pred_check_branch
      %83 = sbr.rel (0) target = $region25
    $region24: #{tpu_custom_call.1} parent=1 // pred_region
      %85 = dma.done [#allocation4], 128
    $region25: #{tpu_custom_call.1} parent=1 // pred_fallthru
      _
    %86 = vsyncpa [#allocation3], 1
    %87 = vsyncpa [#allocation6], 1
    %88 = vsyncpa [#allocation4], 1

</llo_original>
